<compile_context>
chip_gen: v7x
topology: tpu7x:2x2x1
jax: 0.10.0
libtpu: 0.0.40
codegen_flags: <defaults>
</compile_context>

<pallas_src>
import functools

import jax
import jax.numpy as jnp
from jax import lax
from jax.experimental import pallas as pl
from jax.experimental.pallas import tpu as pltpu

NUM = 512   # nn.Embedding(num=512, out=8)
OUT = 8

_LANE = 128
_MAX_BLOCK_BYTES = 2 * 1024 * 1024   # per-step output block budget


def _window_copy_kernel(p_ref, out_ref, *, n_res, g, win_rows, k0):
    """Copy one mirrored-table window per output row of this block.

    p_ref:   (n_res, Lp//128, 128) f32 VMEM — lane-shifted mirrored tables
             (constant index_map -> resident across the whole grid).
    out_ref: (n_res*g, win_rows, 128) f32 VMEM — rows [R*t, R*(t+1)) of the
             flat (S, OUT*S) output, already in their final memory layout.
    """
    t = pl.program_id(0)
    for r in range(n_res * g):               # static unroll: pure vreg copies
        rr = r % n_res                        # residue class of the global row
        m = r // n_res                        # 128-element offset group in block
        k = k0[rr] - g * t - m                # slab row where the window starts
        out_ref[r] = p_ref[rr, pl.ds(k, win_rows), :]


def _build_shifted_sources(table, seq_len):
    """(n_res, Lp//128, 128) lane-shifted copies of the flat mirrored table.

    P[rr, :] = mir_flat shifted so that every output row with residue rr reads
    its window at a 128-element boundary (=> whole-vreg copies in the kernel).
    O(seq_len) work + <=0.5 MiB of data; built once by XLA in the wrapper.
    """
    out = table.shape[1]
    n_res = _LANE // out
    # mir[t, :] = table[|t - (S-1)|, :],  t in [0, 2S-1)
    t = jnp.arange(2 * seq_len - 1, dtype=jnp.int32)
    mir = jnp.take(table, jnp.abs(t - (seq_len - 1)), axis=0)       # (2S-1, OUT)
    mir_flat = mir.reshape(-1)                                      # (2*OUT*S - OUT,)
    lp = 2 * out * seq_len                                          # 128 multiple
    mir_pad = jnp.pad(mir_flat, (0, lp + _LANE - mir_flat.shape[0]))
    shifted = []
    for rr in range(n_res):
        a = (out * (seq_len - 1 - rr)) % _LANE        # static lane pre-shift
        shifted.append(mir_pad[a:a + lp])
    p = jnp.stack(shifted, axis=0)                                  # (n_res, Lp)
    return p.reshape(n_res, lp // _LANE, _LANE)


def _pick_groups_per_step(n_groups, bytes_per_group):
    """Largest divisor of n_groups fitting the block budget, keeping >=2 steps."""
    cap = max(1, _MAX_BLOCK_BYTES // max(bytes_per_group, 1))
    best = 1
    for d in range(1, n_groups + 1):
        if d > cap:
            break
        if n_groups % d:
            continue
        if n_groups // d >= 2 or n_groups == 1:
            best = d
    return best


def _pos_emb_pallas(table, seq_len):
    """Returns the flat embedding buffer in final layout: (S, OUT*S//128, 128)."""
    _num, out = table.shape
    n_res = _LANE // out                      # rows per 128-element offset period
    win_rows = (out * seq_len) // _LANE       # 128-lane slab rows per output row
    n_groups = seq_len // n_res               # groups of n_res consecutive rows
    bytes_per_group = n_res * win_rows * _LANE * 4
    g = _pick_groups_per_step(n_groups, bytes_per_group)
    grid = (n_groups // g,)
    rows_per_step = n_res * g

    p = _build_shifted_sources(table, seq_len)          # (n_res, Lp//128, 128)
    lp_rows = p.shape[1]

    # Static window-start (slab rows of p[rr]) for the first row of each residue.
    k0 = tuple((out * (seq_len - 1 - rr)) // _LANE for rr in range(n_res))

    kernel = functools.partial(_window_copy_kernel, n_res=n_res, g=g,
                               win_rows=win_rows, k0=k0)

    return pl.pallas_call(
        kernel,
        out_shape=jax.ShapeDtypeStruct((seq_len, win_rows, _LANE), table.dtype),
        grid=grid,
        in_specs=[
            # Shifted mirrored tables: constant index_map -> DMA'd once, resident.
            pl.BlockSpec((n_res, lp_rows, _LANE), lambda t: (0, 0, 0)),
        ],
        out_specs=pl.BlockSpec((rows_per_step, win_rows, _LANE),
                               lambda t: (t, 0, 0)),
        compiler_params=pltpu.CompilerParams(
            dimension_semantics=("parallel",)),          # megacore split on v7x
    )(p)


def pos_embedding_forward(x, table, *, use_pallas=None):
    """JAX/Pallas equivalent of PosEmbedding.forward.

    x:     (bs, n, seq_len) — only its shape is used, like the PyTorch module.
    table: (NUM, OUT) float32 embedding weights.
    returns: (bs, OUT, seq_len, seq_len) float32
    """
    bs, _n, seq_len = x.shape
    num, out = table.shape
    if seq_len > num:
        raise ValueError(
            f"seq_len={seq_len} exceeds embedding rows num={num}; "
            "torch nn.Embedding would raise an index error here.")

    compatible = (_LANE % out == 0) and ((out * seq_len) % _LANE == 0)
    if use_pallas is None:
        use_pallas = compatible and seq_len >= 32
    if use_pallas and not compatible:
        raise ValueError(
            "Pallas fast path requires 128 % out == 0 and (out*seq_len) % 128 == 0; "
            f"got out={out}, seq_len={seq_len}.")

    if use_pallas:
        flat = _pos_emb_pallas(table, seq_len)            # (S, OUT*S/128, 128)
        emb = flat.reshape(out, seq_len, seq_len)         # free contiguous reshape (torch .view)
    else:
        # Tiny/incompatible shapes: plain XLA gather (output is a few KiB here).
        pos = jnp.arange(seq_len, dtype=jnp.int32)
        dist = jnp.abs(pos[:, None] - pos[None, :]).reshape(-1)
        emb_flat = jnp.take(table, dist, axis=0)          # (S*S, OUT)
        emb = emb_flat.reshape(out, seq_len, seq_len)     # raw row-major reshape

    # torch tiles over batch; broadcast_to stays lazy/fusable under jit so bs
    # copies are not written to HBM unless the consumer forces it.
    return jnp.broadcast_to(emb[None], (bs, out, seq_len, seq_len))


def _reference_forward(x, table):
    """Pure-JAX reference with the exact PyTorch forward semantics."""
    bs, _n, s = x.shape
    _num, out = table.shape
    pos = jnp.arange(s)
    dist = jnp.abs(pos[:, None] - pos[None, :])
    ref = table[dist.reshape(-1)]                    # (S*S, OUT)
    ref = ref.reshape(out, s, s)                     # raw row-major reshape (torch .view)
    return jnp.broadcast_to(ref[None], (bs, out, s, s))


if __name__ == "__main__":
    key = jax.random.PRNGKey(0)
    k_x, k_w = jax.random.split(key)

    # nn.Embedding default init: N(0, 1).
    table = jax.random.normal(k_w, (NUM, OUT), dtype=jnp.float32)
    bs, n = 2, 4

    # 1) Module-default smoke shape (S=8): OUT*S is not a lane multiple, so the
    #    wrapper takes the XLA-gather fallback.
    seq_small = 8
    x_small = jax.random.normal(k_x, (bs, n, seq_small), dtype=jnp.float32)
    out_small = jax.block_until_ready(pos_embedding_forward(x_small, table))
    ref_small = _reference_forward(x_small, table)
    assert out_small.shape == (bs, OUT, seq_small, seq_small), out_small.shape
    assert out_small.dtype == jnp.float32, out_small.dtype
    assert jnp.allclose(out_small, ref_small, atol=1e-6), "fallback mismatch (S=8)"

    # 2) S=64: Pallas windowed-copy path, forced (grid=2 steps, 32 rows/step).
    seq_mid = 64
    x_mid = jnp.zeros((bs, n, seq_mid), dtype=jnp.float32)
    out_mid = jax.block_until_ready(
        pos_embedding_forward(x_mid, table, use_pallas=True))
    assert out_mid.shape == (bs, OUT, seq_mid, seq_mid), out_mid.shape
    assert jnp.allclose(out_mid, _reference_forward(x_mid, table),
                        atol=1e-6), "pallas mismatch (S=64)"

    # 3) S=144: Pallas path via the default auto-selection (grid=3 steps,
    #    48 rows/step, 9 slab rows per window).
    seq_big = 144
    x_big = jnp.zeros((bs, n, seq_big), dtype=jnp.float32)
    out_big = jax.block_until_ready(pos_embedding_forward(x_big, table))
    assert out_big.shape == (bs, OUT, seq_big, seq_big), out_big.shape
    assert jnp.allclose(out_big, _reference_forward(x_big, table),
                        atol=1e-6), "pallas mismatch (S=144)"

    print("KERNEL_OK")
</pallas_src>

<mosaic_0001>
module attributes {stable_mosaic.version = 11 : i64} {
  func.func @_window_copy_kernel(%arg0: i32, %arg1: memref<16x8x128xf32, #tpu.memory_space<vmem>>, %arg2: memref<32x4x128xf32, #tpu.memory_space<vmem>>) attributes {dimension_semantics = [#tpu.dimension_semantics<parallel>], iteration_bounds = array<i64: 2>, scalar_prefetch = 0 : i64, scratch_operands = 0 : i64, tpu.core_type = #tpu.core_type<tc>, window_params = [{pipeline_mode = #tpu.pipeline_mode<synchronous>, transform_indices = @transform_0, window_bounds = array<i64: 16, 8, 128>}, {transform_indices = @transform_1, window_bounds = array<i64: 32, 4, 128>}]} {
    %c2_i32 = arith.constant 2 : i32
    %0 = arith.muli %c2_i32, %arg0 : i32
    %c3_i32 = arith.constant 3 : i32
    %1 = arith.subi %c3_i32, %0 : i32
    %c0_i32 = arith.constant 0 : i32
    %2 = arith.subi %1, %c0_i32 : i32
    %c0 = arith.constant 0 : index
    %3 = arith.index_cast %2 : i32 to index
    %c0_0 = arith.constant 0 : index
    %4 = vector.load %arg1[%c0, %3, %c0_0] : memref<16x8x128xf32, #tpu.memory_space<vmem>>, vector<1x4x128xf32>
    %5 = vector.shape_cast %4 : vector<1x4x128xf32> to vector<4x128xf32>
    %c0_1 = arith.constant 0 : index
    %c0_2 = arith.constant 0 : index
    %c0_3 = arith.constant 0 : index
    %6 = vector.load %arg2[%c0_1, %c0_2, %c0_3] : memref<32x4x128xf32, #tpu.memory_space<vmem>>, vector<1x4x128xf32>
    %7 = vector.shape_cast %6 : vector<1x4x128xf32> to vector<4x128xf32>
    %8 = vector.shape_cast %5 : vector<4x128xf32> to vector<1x4x128xf32>
    tpu.vector_store %arg2[%c0_1, %c0_2, %c0_3], %8 {strides = array<i32>} : memref<32x4x128xf32, #tpu.memory_space<vmem>>, vector<1x4x128xf32>,
    %c2_i32_4 = arith.constant 2 : i32
    %9 = arith.muli %c2_i32_4, %arg0 : i32
    %c3_i32_5 = arith.constant 3 : i32
    %10 = arith.subi %c3_i32_5, %9 : i32
    %c0_i32_6 = arith.constant 0 : i32
    %11 = arith.subi %10, %c0_i32_6 : i32
    %c1 = arith.constant 1 : index
    %12 = arith.index_cast %11 : i32 to index
    %c0_7 = arith.constant 0 : index
    %13 = vector.load %arg1[%c1, %12, %c0_7] : memref<16x8x128xf32, #tpu.memory_space<vmem>>, vector<1x4x128xf32>
    %14 = vector.shape_cast %13 : vector<1x4x128xf32> to vector<4x128xf32>
    %c1_8 = arith.constant 1 : index
    %c0_9 = arith.constant 0 : index
    %c0_10 = arith.constant 0 : index
    %15 = vector.load %arg2[%c1_8, %c0_9, %c0_10] : memref<32x4x128xf32, #tpu.memory_space<vmem>>, vector<1x4x128xf32>
    %16 = vector.shape_cast %15 : vector<1x4x128xf32> to vector<4x128xf32>
    %17 = vector.shape_cast %14 : vector<4x128xf32> to vector<1x4x128xf32>
    tpu.vector_store %arg2[%c1_8, %c0_9, %c0_10], %17 {strides = array<i32>} : memref<32x4x128xf32, #tpu.memory_space<vmem>>, vector<1x4x128xf32>,
    %c2_i32_11 = arith.constant 2 : i32
    %18 = arith.muli %c2_i32_11, %arg0 : i32
    %c3_i32_12 = arith.constant 3 : i32
    %19 = arith.subi %c3_i32_12, %18 : i32
    %c0_i32_13 = arith.constant 0 : i32
    %20 = arith.subi %19, %c0_i32_13 : i32
    %c2 = arith.constant 2 : index
    %21 = arith.index_cast %20 : i32 to index
    %c0_14 = arith.constant 0 : index
    %22 = vector.load %arg1[%c2, %21, %c0_14] : memref<16x8x128xf32, #tpu.memory_space<vmem>>, vector<1x4x128xf32>
    %23 = vector.shape_cast %22 : vector<1x4x128xf32> to vector<4x128xf32>
    %c2_15 = arith.constant 2 : index
    %c0_16 = arith.constant 0 : index
    %c0_17 = arith.constant 0 : index
    %24 = vector.load %arg2[%c2_15, %c0_16, %c0_17] : memref<32x4x128xf32, #tpu.memory_space<vmem>>, vector<1x4x128xf32>
    %25 = vector.shape_cast %24 : vector<1x4x128xf32> to vector<4x128xf32>
    %26 = vector.shape_cast %23 : vector<4x128xf32> to vector<1x4x128xf32>
    tpu.vector_store %arg2[%c2_15, %c0_16, %c0_17], %26 {strides = array<i32>} : memref<32x4x128xf32, #tpu.memory_space<vmem>>, vector<1x4x128xf32>,
    %c2_i32_18 = arith.constant 2 : i32
    %27 = arith.muli %c2_i32_18, %arg0 : i32
    %c3_i32_19 = arith.constant 3 : i32
    %28 = arith.subi %c3_i32_19, %27 : i32
    %c0_i32_20 = arith.constant 0 : i32
    %29 = arith.subi %28, %c0_i32_20 : i32
    %c3 = arith.constant 3 : index
    %30 = arith.index_cast %29 : i32 to index
    %c0_21 = arith.constant 0 : index
    %31 = vector.load %arg1[%c3, %30, %c0_21] : memref<16x8x128xf32, #tpu.memory_space<vmem>>, vector<1x4x128xf32>
    %32 = vector.shape_cast %31 : vector<1x4x128xf32> to vector<4x128xf32>
    %c3_22 = arith.constant 3 : index
    %c0_23 = arith.constant 0 : index
    %c0_24 = arith.constant 0 : index
    %33 = vector.load %arg2[%c3_22, %c0_23, %c0_24] : memref<32x4x128xf32, #tpu.memory_space<vmem>>, vector<1x4x128xf32>
    %34 = vector.shape_cast %33 : vector<1x4x128xf32> to vector<4x128xf32>
    %35 = vector.shape_cast %32 : vector<4x128xf32> to vector<1x4x128xf32>
    tpu.vector_store %arg2[%c3_22, %c0_23, %c0_24], %35 {strides = array<i32>} : memref<32x4x128xf32, #tpu.memory_space<vmem>>, vector<1x4x128xf32>,
    %c2_i32_25 = arith.constant 2 : i32
    %36 = arith.muli %c2_i32_25, %arg0 : i32
    %c3_i32_26 = arith.constant 3 : i32
    %37 = arith.subi %c3_i32_26, %36 : i32
    %c0_i32_27 = arith.constant 0 : i32
    %38 = arith.subi %37, %c0_i32_27 : i32
    %c4 = arith.constant 4 : index
    %39 = arith.index_cast %38 : i32 to index
    %c0_28 = arith.constant 0 : index
    %40 = vector.load %arg1[%c4, %39, %c0_28] : memref<16x8x128xf32, #tpu.memory_space<vmem>>, vector<1x4x128xf32>
    %41 = vector.shape_cast %40 : vector<1x4x128xf32> to vector<4x128xf32>
    %c4_29 = arith.constant 4 : index
    %c0_30 = arith.constant 0 : index
    %c0_31 = arith.constant 0 : index
    %42 = vector.load %arg2[%c4_29, %c0_30, %c0_31] : memref<32x4x128xf32, #tpu.memory_space<vmem>>, vector<1x4x128xf32>
    %43 = vector.shape_cast %42 : vector<1x4x128xf32> to vector<4x128xf32>
    %44 = vector.shape_cast %41 : vector<4x128xf32> to vector<1x4x128xf32>
    tpu.vector_store %arg2[%c4_29, %c0_30, %c0_31], %44 {strides = array<i32>} : memref<32x4x128xf32, #tpu.memory_space<vmem>>, vector<1x4x128xf32>,
    %c2_i32_32 = arith.constant 2 : i32
    %45 = arith.muli %c2_i32_32, %arg0 : i32
    %c3_i32_33 = arith.constant 3 : i32
    %46 = arith.subi %c3_i32_33, %45 : i32
    %c0_i32_34 = arith.constant 0 : i32
    %47 = arith.subi %46, %c0_i32_34 : i32
    %c5 = arith.constant 5 : index
    %48 = arith.index_cast %47 : i32 to index
    %c0_35 = arith.constant 0 : index
    %49 = vector.load %arg1[%c5, %48, %c0_35] : memref<16x8x128xf32, #tpu.memory_space<vmem>>, vector<1x4x128xf32>
    %50 = vector.shape_cast %49 : vector<1x4x128xf32> to vector<4x128xf32>
    %c5_36 = arith.constant 5 : index
    %c0_37 = arith.constant 0 : index
    %c0_38 = arith.constant 0 : index
    %51 = vector.load %arg2[%c5_36, %c0_37, %c0_38] : memref<32x4x128xf32, #tpu.memory_space<vmem>>, vector<1x4x128xf32>
    %52 = vector.shape_cast %51 : vector<1x4x128xf32> to vector<4x128xf32>
    %53 = vector.shape_cast %50 : vector<4x128xf32> to vector<1x4x128xf32>
    tpu.vector_store %arg2[%c5_36, %c0_37, %c0_38], %53 {strides = array<i32>} : memref<32x4x128xf32, #tpu.memory_space<vmem>>, vector<1x4x128xf32>,
    %c2_i32_39 = arith.constant 2 : i32
    %54 = arith.muli %c2_i32_39, %arg0 : i32
    %c3_i32_40 = arith.constant 3 : i32
    %55 = arith.subi %c3_i32_40, %54 : i32
    %c0_i32_41 = arith.constant 0 : i32
    %56 = arith.subi %55, %c0_i32_41 : i32
    %c6 = arith.constant 6 : index
    %57 = arith.index_cast %56 : i32 to index
    %c0_42 = arith.constant 0 : index
    %58 = vector.load %arg1[%c6, %57, %c0_42] : memref<16x8x128xf32, #tpu.memory_space<vmem>>, vector<1x4x128xf32>
    %59 = vector.shape_cast %58 : vector<1x4x128xf32> to vector<4x128xf32>
    %c6_43 = arith.constant 6 : index
    %c0_44 = arith.constant 0 : index
    %c0_45 = arith.constant 0 : index
    %60 = vector.load %arg2[%c6_43, %c0_44, %c0_45] : memref<32x4x128xf32, #tpu.memory_space<vmem>>, vector<1x4x128xf32>
    %61 = vector.shape_cast %60 : vector<1x4x128xf32> to vector<4x128xf32>
    %62 = vector.shape_cast %59 : vector<4x128xf32> to vector<1x4x128xf32>
    tpu.vector_store %arg2[%c6_43, %c0_44, %c0_45], %62 {strides = array<i32>} : memref<32x4x128xf32, #tpu.memory_space<vmem>>, vector<1x4x128xf32>,
    %c2_i32_46 = arith.constant 2 : i32
    %63 = arith.muli %c2_i32_46, %arg0 : i32
    %c3_i32_47 = arith.constant 3 : i32
    %64 = arith.subi %c3_i32_47, %63 : i32
    %c0_i32_48 = arith.constant 0 : i32
    %65 = arith.subi %64, %c0_i32_48 : i32
    %c7 = arith.constant 7 : index
    %66 = arith.index_cast %65 : i32 to index
    %c0_49 = arith.constant 0 : index
    %67 = vector.load %arg1[%c7, %66, %c0_49] : memref<16x8x128xf32, #tpu.memory_space<vmem>>, vector<1x4x128xf32>
    %68 = vector.shape_cast %67 : vector<1x4x128xf32> to vector<4x128xf32>
    %c7_50 = arith.constant 7 : index
    %c0_51 = arith.constant 0 : index
    %c0_52 = arith.constant 0 : index
    %69 = vector.load %arg2[%c7_50, %c0_51, %c0_52] : memref<32x4x128xf32, #tpu.memory_space<vmem>>, vector<1x4x128xf32>
    %70 = vector.shape_cast %69 : vector<1x4x128xf32> to vector<4x128xf32>
    %71 = vector.shape_cast %68 : vector<4x128xf32> to vector<1x4x128xf32>
    tpu.vector_store %arg2[%c7_50, %c0_51, %c0_52], %71 {strides = array<i32>} : memref<32x4x128xf32, #tpu.memory_space<vmem>>, vector<1x4x128xf32>,
    %c2_i32_53 = arith.constant 2 : i32
    %72 = arith.muli %c2_i32_53, %arg0 : i32
    %c3_i32_54 = arith.constant 3 : i32
    %73 = arith.subi %c3_i32_54, %72 : i32
    %c0_i32_55 = arith.constant 0 : i32
    %74 = arith.subi %73, %c0_i32_55 : i32
    %c8 = arith.constant 8 : index
    %75 = arith.index_cast %74 : i32 to index
    %c0_56 = arith.constant 0 : index
    %76 = vector.load %arg1[%c8, %75, %c0_56] : memref<16x8x128xf32, #tpu.memory_space<vmem>>, vector<1x4x128xf32>
    %77 = vector.shape_cast %76 : vector<1x4x128xf32> to vector<4x128xf32>
    %c8_57 = arith.constant 8 : index
    %c0_58 = arith.constant 0 : index
    %c0_59 = arith.constant 0 : index
    %78 = vector.load %arg2[%c8_57, %c0_58, %c0_59] : memref<32x4x128xf32, #tpu.memory_space<vmem>>, vector<1x4x128xf32>
    %79 = vector.shape_cast %78 : vector<1x4x128xf32> to vector<4x128xf32>
    %80 = vector.shape_cast %77 : vector<4x128xf32> to vector<1x4x128xf32>
    tpu.vector_store %arg2[%c8_57, %c0_58, %c0_59], %80 {strides = array<i32>} : memref<32x4x128xf32, #tpu.memory_space<vmem>>, vector<1x4x128xf32>,
    %c2_i32_60 = arith.constant 2 : i32
    %81 = arith.muli %c2_i32_60, %arg0 : i32
    %c3_i32_61 = arith.constant 3 : i32
    %82 = arith.subi %c3_i32_61, %81 : i32
    %c0_i32_62 = arith.constant 0 : i32
    %83 = arith.subi %82, %c0_i32_62 : i32
    %c9 = arith.constant 9 : index
    %84 = arith.index_cast %83 : i32 to index
    %c0_63 = arith.constant 0 : index
    %85 = vector.load %arg1[%c9, %84, %c0_63] : memref<16x8x128xf32, #tpu.memory_space<vmem>>, vector<1x4x128xf32>
    %86 = vector.shape_cast %85 : vector<1x4x128xf32> to vector<4x128xf32>
    %c9_64 = arith.constant 9 : index
    %c0_65 = arith.constant 0 : index
    %c0_66 = arith.constant 0 : index
    %87 = vector.load %arg2[%c9_64, %c0_65, %c0_66] : memref<32x4x128xf32, #tpu.memory_space<vmem>>, vector<1x4x128xf32>
    %88 = vector.shape_cast %87 : vector<1x4x128xf32> to vector<4x128xf32>
    %89 = vector.shape_cast %86 : vector<4x128xf32> to vector<1x4x128xf32>
    tpu.vector_store %arg2[%c9_64, %c0_65, %c0_66], %89 {strides = array<i32>} : memref<32x4x128xf32, #tpu.memory_space<vmem>>, vector<1x4x128xf32>,
    %c2_i32_67 = arith.constant 2 : i32
    %90 = arith.muli %c2_i32_67, %arg0 : i32
    %c3_i32_68 = arith.constant 3 : i32
    %91 = arith.subi %c3_i32_68, %90 : i32
    %c0_i32_69 = arith.constant 0 : i32
    %92 = arith.subi %91, %c0_i32_69 : i32
    %c10 = arith.constant 10 : index
    %93 = arith.index_cast %92 : i32 to index
    %c0_70 = arith.constant 0 : index
    %94 = vector.load %arg1[%c10, %93, %c0_70] : memref<16x8x128xf32, #tpu.memory_space<vmem>>, vector<1x4x128xf32>
    %95 = vector.shape_cast %94 : vector<1x4x128xf32> to vector<4x128xf32>
    %c10_71 = arith.constant 10 : index
    %c0_72 = arith.constant 0 : index
    %c0_73 = arith.constant 0 : index
    %96 = vector.load %arg2[%c10_71, %c0_72, %c0_73] : memref<32x4x128xf32, #tpu.memory_space<vmem>>, vector<1x4x128xf32>
    %97 = vector.shape_cast %96 : vector<1x4x128xf32> to vector<4x128xf32>
    %98 = vector.shape_cast %95 : vector<4x128xf32> to vector<1x4x128xf32>
    tpu.vector_store %arg2[%c10_71, %c0_72, %c0_73], %98 {strides = array<i32>} : memref<32x4x128xf32, #tpu.memory_space<vmem>>, vector<1x4x128xf32>,
    %c2_i32_74 = arith.constant 2 : i32
    %99 = arith.muli %c2_i32_74, %arg0 : i32
    %c3_i32_75 = arith.constant 3 : i32
    %100 = arith.subi %c3_i32_75, %99 : i32
    %c0_i32_76 = arith.constant 0 : i32
    %101 = arith.subi %100, %c0_i32_76 : i32
    %c11 = arith.constant 11 : index
    %102 = arith.index_cast %101 : i32 to index
    %c0_77 = arith.constant 0 : index
    %103 = vector.load %arg1[%c11, %102, %c0_77] : memref<16x8x128xf32, #tpu.memory_space<vmem>>, vector<1x4x128xf32>
    %104 = vector.shape_cast %103 : vector<1x4x128xf32> to vector<4x128xf32>
    %c11_78 = arith.constant 11 : index
    %c0_79 = arith.constant 0 : index
    %c0_80 = arith.constant 0 : index
    %105 = vector.load %arg2[%c11_78, %c0_79, %c0_80] : memref<32x4x128xf32, #tpu.memory_space<vmem>>, vector<1x4x128xf32>
    %106 = vector.shape_cast %105 : vector<1x4x128xf32> to vector<4x128xf32>
    %107 = vector.shape_cast %104 : vector<4x128xf32> to vector<1x4x128xf32>
    tpu.vector_store %arg2[%c11_78, %c0_79, %c0_80], %107 {strides = array<i32>} : memref<32x4x128xf32, #tpu.memory_space<vmem>>, vector<1x4x128xf32>,
    %c2_i32_81 = arith.constant 2 : i32
    %108 = arith.muli %c2_i32_81, %arg0 : i32
    %c3_i32_82 = arith.constant 3 : i32
    %109 = arith.subi %c3_i32_82, %108 : i32
    %c0_i32_83 = arith.constant 0 : i32
    %110 = arith.subi %109, %c0_i32_83 : i32
    %c12 = arith.constant 12 : index
    %111 = arith.index_cast %110 : i32 to index
    %c0_84 = arith.constant 0 : index
    %112 = vector.load %arg1[%c12, %111, %c0_84] : memref<16x8x128xf32, #tpu.memory_space<vmem>>, vector<1x4x128xf32>
    %113 = vector.shape_cast %112 : vector<1x4x128xf32> to vector<4x128xf32>
    %c12_85 = arith.constant 12 : index
    %c0_86 = arith.constant 0 : index
    %c0_87 = arith.constant 0 : index
    %114 = vector.load %arg2[%c12_85, %c0_86, %c0_87] : memref<32x4x128xf32, #tpu.memory_space<vmem>>, vector<1x4x128xf32>
    %115 = vector.shape_cast %114 : vector<1x4x128xf32> to vector<4x128xf32>
    %116 = vector.shape_cast %113 : vector<4x128xf32> to vector<1x4x128xf32>
    tpu.vector_store %arg2[%c12_85, %c0_86, %c0_87], %116 {strides = array<i32>} : memref<32x4x128xf32, #tpu.memory_space<vmem>>, vector<1x4x128xf32>,
    %c2_i32_88 = arith.constant 2 : i32
    %117 = arith.muli %c2_i32_88, %arg0 : i32
    %c3_i32_89 = arith.constant 3 : i32
    %118 = arith.subi %c3_i32_89, %117 : i32
    %c0_i32_90 = arith.constant 0 : i32
    %119 = arith.subi %118, %c0_i32_90 : i32
    %c13 = arith.constant 13 : index
    %120 = arith.index_cast %119 : i32 to index
    %c0_91 = arith.constant 0 : index
    %121 = vector.load %arg1[%c13, %120, %c0_91] : memref<16x8x128xf32, #tpu.memory_space<vmem>>, vector<1x4x128xf32>
    %122 = vector.shape_cast %121 : vector<1x4x128xf32> to vector<4x128xf32>
    %c13_92 = arith.constant 13 : index
    %c0_93 = arith.constant 0 : index
    %c0_94 = arith.constant 0 : index
    %123 = vector.load %arg2[%c13_92, %c0_93, %c0_94] : memref<32x4x128xf32, #tpu.memory_space<vmem>>, vector<1x4x128xf32>
    %124 = vector.shape_cast %123 : vector<1x4x128xf32> to vector<4x128xf32>
    %125 = vector.shape_cast %122 : vector<4x128xf32> to vector<1x4x128xf32>
    tpu.vector_store %arg2[%c13_92, %c0_93, %c0_94], %125 {strides = array<i32>} : memref<32x4x128xf32, #tpu.memory_space<vmem>>, vector<1x4x128xf32>,
    %c2_i32_95 = arith.constant 2 : i32
    %126 = arith.muli %c2_i32_95, %arg0 : i32
    %c3_i32_96 = arith.constant 3 : i32
    %127 = arith.subi %c3_i32_96, %126 : i32
    %c0_i32_97 = arith.constant 0 : i32
    %128 = arith.subi %127, %c0_i32_97 : i32
    %c14 = arith.constant 14 : index
    %129 = arith.index_cast %128 : i32 to index
    %c0_98 = arith.constant 0 : index
    %130 = vector.load %arg1[%c14, %129, %c0_98] : memref<16x8x128xf32, #tpu.memory_space<vmem>>, vector<1x4x128xf32>
    %131 = vector.shape_cast %130 : vector<1x4x128xf32> to vector<4x128xf32>
    %c14_99 = arith.constant 14 : index
    %c0_100 = arith.constant 0 : index
    %c0_101 = arith.constant 0 : index
    %132 = vector.load %arg2[%c14_99, %c0_100, %c0_101] : memref<32x4x128xf32, #tpu.memory_space<vmem>>, vector<1x4x128xf32>
    %133 = vector.shape_cast %132 : vector<1x4x128xf32> to vector<4x128xf32>
    %134 = vector.shape_cast %131 : vector<4x128xf32> to vector<1x4x128xf32>
    tpu.vector_store %arg2[%c14_99, %c0_100, %c0_101], %134 {strides = array<i32>} : memref<32x4x128xf32, #tpu.memory_space<vmem>>, vector<1x4x128xf32>,
    %c2_i32_102 = arith.constant 2 : i32
    %135 = arith.muli %c2_i32_102, %arg0 : i32
    %c3_i32_103 = arith.constant 3 : i32
    %136 = arith.subi %c3_i32_103, %135 : i32
    %c0_i32_104 = arith.constant 0 : i32
    %137 = arith.subi %136, %c0_i32_104 : i32
    %c15 = arith.constant 15 : index
    %138 = arith.index_cast %137 : i32 to index
    %c0_105 = arith.constant 0 : index
    %139 = vector.load %arg1[%c15, %138, %c0_105] : memref<16x8x128xf32, #tpu.memory_space<vmem>>, vector<1x4x128xf32>
    %140 = vector.shape_cast %139 : vector<1x4x128xf32> to vector<4x128xf32>
    %c15_106 = arith.constant 15 : index
    %c0_107 = arith.constant 0 : index
    %c0_108 = arith.constant 0 : index
    %141 = vector.load %arg2[%c15_106, %c0_107, %c0_108] : memref<32x4x128xf32, #tpu.memory_space<vmem>>, vector<1x4x128xf32>
    %142 = vector.shape_cast %141 : vector<1x4x128xf32> to vector<4x128xf32>
    %143 = vector.shape_cast %140 : vector<4x128xf32> to vector<1x4x128xf32>
    tpu.vector_store %arg2[%c15_106, %c0_107, %c0_108], %143 {strides = array<i32>} : memref<32x4x128xf32, #tpu.memory_space<vmem>>, vector<1x4x128xf32>,
    %c2_i32_109 = arith.constant 2 : i32
    %144 = arith.muli %c2_i32_109, %arg0 : i32
    %c3_i32_110 = arith.constant 3 : i32
    %145 = arith.subi %c3_i32_110, %144 : i32
    %c1_i32 = arith.constant 1 : i32
    %146 = arith.subi %145, %c1_i32 : i32
    %c0_111 = arith.constant 0 : index
    %147 = arith.index_cast %146 : i32 to index
    %c0_112 = arith.constant 0 : index
    %148 = vector.load %arg1[%c0_111, %147, %c0_112] : memref<16x8x128xf32, #tpu.memory_space<vmem>>, vector<1x4x128xf32>
    %149 = vector.shape_cast %148 : vector<1x4x128xf32> to vector<4x128xf32>
    %c16 = arith.constant 16 : index
    %c0_113 = arith.constant 0 : index
    %c0_114 = arith.constant 0 : index
    %150 = vector.load %arg2[%c16, %c0_113, %c0_114] : memref<32x4x128xf32, #tpu.memory_space<vmem>>, vector<1x4x128xf32>
    %151 = vector.shape_cast %150 : vector<1x4x128xf32> to vector<4x128xf32>
    %152 = vector.shape_cast %149 : vector<4x128xf32> to vector<1x4x128xf32>
    tpu.vector_store %arg2[%c16, %c0_113, %c0_114], %152 {strides = array<i32>} : memref<32x4x128xf32, #tpu.memory_space<vmem>>, vector<1x4x128xf32>,
    %c2_i32_115 = arith.constant 2 : i32
    %153 = arith.muli %c2_i32_115, %arg0 : i32
    %c3_i32_116 = arith.constant 3 : i32
    %154 = arith.subi %c3_i32_116, %153 : i32
    %c1_i32_117 = arith.constant 1 : i32
    %155 = arith.subi %154, %c1_i32_117 : i32
    %c1_118 = arith.constant 1 : index
    %156 = arith.index_cast %155 : i32 to index
    %c0_119 = arith.constant 0 : index
    %157 = vector.load %arg1[%c1_118, %156, %c0_119] : memref<16x8x128xf32, #tpu.memory_space<vmem>>, vector<1x4x128xf32>
    %158 = vector.shape_cast %157 : vector<1x4x128xf32> to vector<4x128xf32>
    %c17 = arith.constant 17 : index
    %c0_120 = arith.constant 0 : index
    %c0_121 = arith.constant 0 : index
    %159 = vector.load %arg2[%c17, %c0_120, %c0_121] : memref<32x4x128xf32, #tpu.memory_space<vmem>>, vector<1x4x128xf32>
    %160 = vector.shape_cast %159 : vector<1x4x128xf32> to vector<4x128xf32>
    %161 = vector.shape_cast %158 : vector<4x128xf32> to vector<1x4x128xf32>
    tpu.vector_store %arg2[%c17, %c0_120, %c0_121], %161 {strides = array<i32>} : memref<32x4x128xf32, #tpu.memory_space<vmem>>, vector<1x4x128xf32>,
    %c2_i32_122 = arith.constant 2 : i32
    %162 = arith.muli %c2_i32_122, %arg0 : i32
    %c3_i32_123 = arith.constant 3 : i32
    %163 = arith.subi %c3_i32_123, %162 : i32
    %c1_i32_124 = arith.constant 1 : i32
    %164 = arith.subi %163, %c1_i32_124 : i32
    %c2_125 = arith.constant 2 : index
    %165 = arith.index_cast %164 : i32 to index
    %c0_126 = arith.constant 0 : index
    %166 = vector.load %arg1[%c2_125, %165, %c0_126] : memref<16x8x128xf32, #tpu.memory_space<vmem>>, vector<1x4x128xf32>
    %167 = vector.shape_cast %166 : vector<1x4x128xf32> to vector<4x128xf32>
    %c18 = arith.constant 18 : index
    %c0_127 = arith.constant 0 : index
    %c0_128 = arith.constant 0 : index
    %168 = vector.load %arg2[%c18, %c0_127, %c0_128] : memref<32x4x128xf32, #tpu.memory_space<vmem>>, vector<1x4x128xf32>
    %169 = vector.shape_cast %168 : vector<1x4x128xf32> to vector<4x128xf32>
    %170 = vector.shape_cast %167 : vector<4x128xf32> to vector<1x4x128xf32>
    tpu.vector_store %arg2[%c18, %c0_127, %c0_128], %170 {strides = array<i32>} : memref<32x4x128xf32, #tpu.memory_space<vmem>>, vector<1x4x128xf32>,
    %c2_i32_129 = arith.constant 2 : i32
    %171 = arith.muli %c2_i32_129, %arg0 : i32
    %c3_i32_130 = arith.constant 3 : i32
    %172 = arith.subi %c3_i32_130, %171 : i32
    %c1_i32_131 = arith.constant 1 : i32
    %173 = arith.subi %172, %c1_i32_131 : i32
    %c3_132 = arith.constant 3 : index
    %174 = arith.index_cast %173 : i32 to index
    %c0_133 = arith.constant 0 : index
    %175 = vector.load %arg1[%c3_132, %174, %c0_133] : memref<16x8x128xf32, #tpu.memory_space<vmem>>, vector<1x4x128xf32>
    %176 = vector.shape_cast %175 : vector<1x4x128xf32> to vector<4x128xf32>
    %c19 = arith.constant 19 : index
    %c0_134 = arith.constant 0 : index
    %c0_135 = arith.constant 0 : index
    %177 = vector.load %arg2[%c19, %c0_134, %c0_135] : memref<32x4x128xf32, #tpu.memory_space<vmem>>, vector<1x4x128xf32>
    %178 = vector.shape_cast %177 : vector<1x4x128xf32> to vector<4x128xf32>
    %179 = vector.shape_cast %176 : vector<4x128xf32> to vector<1x4x128xf32>
    tpu.vector_store %arg2[%c19, %c0_134, %c0_135], %179 {strides = array<i32>} : memref<32x4x128xf32, #tpu.memory_space<vmem>>, vector<1x4x128xf32>,
    %c2_i32_136 = arith.constant 2 : i32
    %180 = arith.muli %c2_i32_136, %arg0 : i32
    %c3_i32_137 = arith.constant 3 : i32
    %181 = arith.subi %c3_i32_137, %180 : i32
    %c1_i32_138 = arith.constant 1 : i32
    %182 = arith.subi %181, %c1_i32_138 : i32
    %c4_139 = arith.constant 4 : index
    %183 = arith.index_cast %182 : i32 to index
    %c0_140 = arith.constant 0 : index
    %184 = vector.load %arg1[%c4_139, %183, %c0_140] : memref<16x8x128xf32, #tpu.memory_space<vmem>>, vector<1x4x128xf32>
    %185 = vector.shape_cast %184 : vector<1x4x128xf32> to vector<4x128xf32>
    %c20 = arith.constant 20 : index
    %c0_141 = arith.constant 0 : index
    %c0_142 = arith.constant 0 : index
    %186 = vector.load %arg2[%c20, %c0_141, %c0_142] : memref<32x4x128xf32, #tpu.memory_space<vmem>>, vector<1x4x128xf32>
    %187 = vector.shape_cast %186 : vector<1x4x128xf32> to vector<4x128xf32>
    %188 = vector.shape_cast %185 : vector<4x128xf32> to vector<1x4x128xf32>
    tpu.vector_store %arg2[%c20, %c0_141, %c0_142], %188 {strides = array<i32>} : memref<32x4x128xf32, #tpu.memory_space<vmem>>, vector<1x4x128xf32>,
    %c2_i32_143 = arith.constant 2 : i32
    %189 = arith.muli %c2_i32_143, %arg0 : i32
    %c3_i32_144 = arith.constant 3 : i32
    %190 = arith.subi %c3_i32_144, %189 : i32
    %c1_i32_145 = arith.constant 1 : i32
    %191 = arith.subi %190, %c1_i32_145 : i32
    %c5_146 = arith.constant 5 : index
    %192 = arith.index_cast %191 : i32 to index
    %c0_147 = arith.constant 0 : index
    %193 = vector.load %arg1[%c5_146, %192, %c0_147] : memref<16x8x128xf32, #tpu.memory_space<vmem>>, vector<1x4x128xf32>
    %194 = vector.shape_cast %193 : vector<1x4x128xf32> to vector<4x128xf32>
    %c21 = arith.constant 21 : index
    %c0_148 = arith.constant 0 : index
    %c0_149 = arith.constant 0 : index
    %195 = vector.load %arg2[%c21, %c0_148, %c0_149] : memref<32x4x128xf32, #tpu.memory_space<vmem>>, vector<1x4x128xf32>
    %196 = vector.shape_cast %195 : vector<1x4x128xf32> to vector<4x128xf32>
    %197 = vector.shape_cast %194 : vector<4x128xf32> to vector<1x4x128xf32>
    tpu.vector_store %arg2[%c21, %c0_148, %c0_149], %197 {strides = array<i32>} : memref<32x4x128xf32, #tpu.memory_space<vmem>>, vector<1x4x128xf32>,
    %c2_i32_150 = arith.constant 2 : i32
    %198 = arith.muli %c2_i32_150, %arg0 : i32
    %c3_i32_151 = arith.constant 3 : i32
    %199 = arith.subi %c3_i32_151, %198 : i32
    %c1_i32_152 = arith.constant 1 : i32
    %200 = arith.subi %199, %c1_i32_152 : i32
    %c6_153 = arith.constant 6 : index
    %201 = arith.index_cast %200 : i32 to index
    %c0_154 = arith.constant 0 : index
    %202 = vector.load %arg1[%c6_153, %201, %c0_154] : memref<16x8x128xf32, #tpu.memory_space<vmem>>, vector<1x4x128xf32>
    %203 = vector.shape_cast %202 : vector<1x4x128xf32> to vector<4x128xf32>
    %c22 = arith.constant 22 : index
    %c0_155 = arith.constant 0 : index
    %c0_156 = arith.constant 0 : index
    %204 = vector.load %arg2[%c22, %c0_155, %c0_156] : memref<32x4x128xf32, #tpu.memory_space<vmem>>, vector<1x4x128xf32>
    %205 = vector.shape_cast %204 : vector<1x4x128xf32> to vector<4x128xf32>
    %206 = vector.shape_cast %203 : vector<4x128xf32> to vector<1x4x128xf32>
    tpu.vector_store %arg2[%c22, %c0_155, %c0_156], %206 {strides = array<i32>} : memref<32x4x128xf32, #tpu.memory_space<vmem>>, vector<1x4x128xf32>,
    %c2_i32_157 = arith.constant 2 : i32
    %207 = arith.muli %c2_i32_157, %arg0 : i32
    %c3_i32_158 = arith.constant 3 : i32
    %208 = arith.subi %c3_i32_158, %207 : i32
    %c1_i32_159 = arith.constant 1 : i32
    %209 = arith.subi %208, %c1_i32_159 : i32
    %c7_160 = arith.constant 7 : index
    %210 = arith.index_cast %209 : i32 to index
    %c0_161 = arith.constant 0 : index
    %211 = vector.load %arg1[%c7_160, %210, %c0_161] : memref<16x8x128xf32, #tpu.memory_space<vmem>>, vector<1x4x128xf32>
    %212 = vector.shape_cast %211 : vector<1x4x128xf32> to vector<4x128xf32>
    %c23 = arith.constant 23 : index
    %c0_162 = arith.constant 0 : index
    %c0_163 = arith.constant 0 : index
    %213 = vector.load %arg2[%c23, %c0_162, %c0_163] : memref<32x4x128xf32, #tpu.memory_space<vmem>>, vector<1x4x128xf32>
    %214 = vector.shape_cast %213 : vector<1x4x128xf32> to vector<4x128xf32>
    %215 = vector.shape_cast %212 : vector<4x128xf32> to vector<1x4x128xf32>
    tpu.vector_store %arg2[%c23, %c0_162, %c0_163], %215 {strides = array<i32>} : memref<32x4x128xf32, #tpu.memory_space<vmem>>, vector<1x4x128xf32>,
    %c2_i32_164 = arith.constant 2 : i32
    %216 = arith.muli %c2_i32_164, %arg0 : i32
    %c3_i32_165 = arith.constant 3 : i32
    %217 = arith.subi %c3_i32_165, %216 : i32
    %c1_i32_166 = arith.constant 1 : i32
    %218 = arith.subi %217, %c1_i32_166 : i32
    %c8_167 = arith.constant 8 : index
    %219 = arith.index_cast %218 : i32 to index
    %c0_168 = arith.constant 0 : index
    %220 = vector.load %arg1[%c8_167, %219, %c0_168] : memref<16x8x128xf32, #tpu.memory_space<vmem>>, vector<1x4x128xf32>
    %221 = vector.shape_cast %220 : vector<1x4x128xf32> to vector<4x128xf32>
    %c24 = arith.constant 24 : index
    %c0_169 = arith.constant 0 : index
    %c0_170 = arith.constant 0 : index
    %222 = vector.load %arg2[%c24, %c0_169, %c0_170] : memref<32x4x128xf32, #tpu.memory_space<vmem>>, vector<1x4x128xf32>
    %223 = vector.shape_cast %222 : vector<1x4x128xf32> to vector<4x128xf32>
    %224 = vector.shape_cast %221 : vector<4x128xf32> to vector<1x4x128xf32>
    tpu.vector_store %arg2[%c24, %c0_169, %c0_170], %224 {strides = array<i32>} : memref<32x4x128xf32, #tpu.memory_space<vmem>>, vector<1x4x128xf32>,
    %c2_i32_171 = arith.constant 2 : i32
    %225 = arith.muli %c2_i32_171, %arg0 : i32
    %c3_i32_172 = arith.constant 3 : i32
    %226 = arith.subi %c3_i32_172, %225 : i32
    %c1_i32_173 = arith.constant 1 : i32
    %227 = arith.subi %226, %c1_i32_173 : i32
    %c9_174 = arith.constant 9 : index
    %228 = arith.index_cast %227 : i32 to index
    %c0_175 = arith.constant 0 : index
    %229 = vector.load %arg1[%c9_174, %228, %c0_175] : memref<16x8x128xf32, #tpu.memory_space<vmem>>, vector<1x4x128xf32>
    %230 = vector.shape_cast %229 : vector<1x4x128xf32> to vector<4x128xf32>
    %c25 = arith.constant 25 : index
    %c0_176 = arith.constant 0 : index
    %c0_177 = arith.constant 0 : index
    %231 = vector.load %arg2[%c25, %c0_176, %c0_177] : memref<32x4x128xf32, #tpu.memory_space<vmem>>, vector<1x4x128xf32>
    %232 = vector.shape_cast %231 : vector<1x4x128xf32> to vector<4x128xf32>
    %233 = vector.shape_cast %230 : vector<4x128xf32> to vector<1x4x128xf32>
    tpu.vector_store %arg2[%c25, %c0_176, %c0_177], %233 {strides = array<i32>} : memref<32x4x128xf32, #tpu.memory_space<vmem>>, vector<1x4x128xf32>,
    %c2_i32_178 = arith.constant 2 : i32
    %234 = arith.muli %c2_i32_178, %arg0 : i32
    %c3_i32_179 = arith.constant 3 : i32
    %235 = arith.subi %c3_i32_179, %234 : i32
    %c1_i32_180 = arith.constant 1 : i32
    %236 = arith.subi %235, %c1_i32_180 : i32
    %c10_181 = arith.constant 10 : index
    %237 = arith.index_cast %236 : i32 to index
    %c0_182 = arith.constant 0 : index
    %238 = vector.load %arg1[%c10_181, %237, %c0_182] : memref<16x8x128xf32, #tpu.memory_space<vmem>>, vector<1x4x128xf32>
    %239 = vector.shape_cast %238 : vector<1x4x128xf32> to vector<4x128xf32>
    %c26 = arith.constant 26 : index
    %c0_183 = arith.constant 0 : index
    %c0_184 = arith.constant 0 : index
    %240 = vector.load %arg2[%c26, %c0_183, %c0_184] : memref<32x4x128xf32, #tpu.memory_space<vmem>>, vector<1x4x128xf32>
    %241 = vector.shape_cast %240 : vector<1x4x128xf32> to vector<4x128xf32>
    %242 = vector.shape_cast %239 : vector<4x128xf32> to vector<1x4x128xf32>
    tpu.vector_store %arg2[%c26, %c0_183, %c0_184], %242 {strides = array<i32>} : memref<32x4x128xf32, #tpu.memory_space<vmem>>, vector<1x4x128xf32>,
    %c2_i32_185 = arith.constant 2 : i32
    %243 = arith.muli %c2_i32_185, %arg0 : i32
    %c3_i32_186 = arith.constant 3 : i32
    %244 = arith.subi %c3_i32_186, %243 : i32
    %c1_i32_187 = arith.constant 1 : i32
    %245 = arith.subi %244, %c1_i32_187 : i32
    %c11_188 = arith.constant 11 : index
    %246 = arith.index_cast %245 : i32 to index
    %c0_189 = arith.constant 0 : index
    %247 = vector.load %arg1[%c11_188, %246, %c0_189] : memref<16x8x128xf32, #tpu.memory_space<vmem>>, vector<1x4x128xf32>
    %248 = vector.shape_cast %247 : vector<1x4x128xf32> to vector<4x128xf32>
    %c27 = arith.constant 27 : index
    %c0_190 = arith.constant 0 : index
    %c0_191 = arith.constant 0 : index
    %249 = vector.load %arg2[%c27, %c0_190, %c0_191] : memref<32x4x128xf32, #tpu.memory_space<vmem>>, vector<1x4x128xf32>
    %250 = vector.shape_cast %249 : vector<1x4x128xf32> to vector<4x128xf32>
    %251 = vector.shape_cast %248 : vector<4x128xf32> to vector<1x4x128xf32>
    tpu.vector_store %arg2[%c27, %c0_190, %c0_191], %251 {strides = array<i32>} : memref<32x4x128xf32, #tpu.memory_space<vmem>>, vector<1x4x128xf32>,
    %c2_i32_192 = arith.constant 2 : i32
    %252 = arith.muli %c2_i32_192, %arg0 : i32
    %c3_i32_193 = arith.constant 3 : i32
    %253 = arith.subi %c3_i32_193, %252 : i32
    %c1_i32_194 = arith.constant 1 : i32
    %254 = arith.subi %253, %c1_i32_194 : i32
    %c12_195 = arith.constant 12 : index
    %255 = arith.index_cast %254 : i32 to index
    %c0_196 = arith.constant 0 : index
    %256 = vector.load %arg1[%c12_195, %255, %c0_196] : memref<16x8x128xf32, #tpu.memory_space<vmem>>, vector<1x4x128xf32>
    %257 = vector.shape_cast %256 : vector<1x4x128xf32> to vector<4x128xf32>
    %c28 = arith.constant 28 : index
    %c0_197 = arith.constant 0 : index
    %c0_198 = arith.constant 0 : index
    %258 = vector.load %arg2[%c28, %c0_197, %c0_198] : memref<32x4x128xf32, #tpu.memory_space<vmem>>, vector<1x4x128xf32>
    %259 = vector.shape_cast %258 : vector<1x4x128xf32> to vector<4x128xf32>
    %260 = vector.shape_cast %257 : vector<4x128xf32> to vector<1x4x128xf32>
    tpu.vector_store %arg2[%c28, %c0_197, %c0_198], %260 {strides = array<i32>} : memref<32x4x128xf32, #tpu.memory_space<vmem>>, vector<1x4x128xf32>,
    %c2_i32_199 = arith.constant 2 : i32
    %261 = arith.muli %c2_i32_199, %arg0 : i32
    %c3_i32_200 = arith.constant 3 : i32
    %262 = arith.subi %c3_i32_200, %261 : i32
    %c1_i32_201 = arith.constant 1 : i32
    %263 = arith.subi %262, %c1_i32_201 : i32
    %c13_202 = arith.constant 13 : index
    %264 = arith.index_cast %263 : i32 to index
    %c0_203 = arith.constant 0 : index
    %265 = vector.load %arg1[%c13_202, %264, %c0_203] : memref<16x8x128xf32, #tpu.memory_space<vmem>>, vector<1x4x128xf32>
    %266 = vector.shape_cast %265 : vector<1x4x128xf32> to vector<4x128xf32>
    %c29 = arith.constant 29 : index
    %c0_204 = arith.constant 0 : index
    %c0_205 = arith.constant 0 : index
    %267 = vector.load %arg2[%c29, %c0_204, %c0_205] : memref<32x4x128xf32, #tpu.memory_space<vmem>>, vector<1x4x128xf32>
    %268 = vector.shape_cast %267 : vector<1x4x128xf32> to vector<4x128xf32>
    %269 = vector.shape_cast %266 : vector<4x128xf32> to vector<1x4x128xf32>
    tpu.vector_store %arg2[%c29, %c0_204, %c0_205], %269 {strides = array<i32>} : memref<32x4x128xf32, #tpu.memory_space<vmem>>, vector<1x4x128xf32>,
    %c2_i32_206 = arith.constant 2 : i32
    %270 = arith.muli %c2_i32_206, %arg0 : i32
    %c3_i32_207 = arith.constant 3 : i32
    %271 = arith.subi %c3_i32_207, %270 : i32
    %c1_i32_208 = arith.constant 1 : i32
    %272 = arith.subi %271, %c1_i32_208 : i32
    %c14_209 = arith.constant 14 : index
    %273 = arith.index_cast %272 : i32 to index
    %c0_210 = arith.constant 0 : index
    %274 = vector.load %arg1[%c14_209, %273, %c0_210] : memref<16x8x128xf32, #tpu.memory_space<vmem>>, vector<1x4x128xf32>
    %275 = vector.shape_cast %274 : vector<1x4x128xf32> to vector<4x128xf32>
    %c30 = arith.constant 30 : index
    %c0_211 = arith.constant 0 : index
    %c0_212 = arith.constant 0 : index
    %276 = vector.load %arg2[%c30, %c0_211, %c0_212] : memref<32x4x128xf32, #tpu.memory_space<vmem>>, vector<1x4x128xf32>
    %277 = vector.shape_cast %276 : vector<1x4x128xf32> to vector<4x128xf32>
    %278 = vector.shape_cast %275 : vector<4x128xf32> to vector<1x4x128xf32>
    tpu.vector_store %arg2[%c30, %c0_211, %c0_212], %278 {strides = array<i32>} : memref<32x4x128xf32, #tpu.memory_space<vmem>>, vector<1x4x128xf32>,
    %c2_i32_213 = arith.constant 2 : i32
    %279 = arith.muli %c2_i32_213, %arg0 : i32
    %c3_i32_214 = arith.constant 3 : i32
    %280 = arith.subi %c3_i32_214, %279 : i32
    %c1_i32_215 = arith.constant 1 : i32
    %281 = arith.subi %280, %c1_i32_215 : i32
    %c15_216 = arith.constant 15 : index
    %282 = arith.index_cast %281 : i32 to index
    %c0_217 = arith.constant 0 : index
    %283 = vector.load %arg1[%c15_216, %282, %c0_217] : memref<16x8x128xf32, #tpu.memory_space<vmem>>, vector<1x4x128xf32>
    %284 = vector.shape_cast %283 : vector<1x4x128xf32> to vector<4x128xf32>
    %c31 = arith.constant 31 : index
    %c0_218 = arith.constant 0 : index
    %c0_219 = arith.constant 0 : index
    %285 = vector.load %arg2[%c31, %c0_218, %c0_219] : memref<32x4x128xf32, #tpu.memory_space<vmem>>, vector<1x4x128xf32>
    %286 = vector.shape_cast %285 : vector<1x4x128xf32> to vector<4x128xf32>
    %287 = vector.shape_cast %284 : vector<4x128xf32> to vector<1x4x128xf32>
    tpu.vector_store %arg2[%c31, %c0_218, %c0_219], %287 {strides = array<i32>} : memref<32x4x128xf32, #tpu.memory_space<vmem>>, vector<1x4x128xf32>,
    return
  }
  func.func @transform_0(%arg0: i32) -> (i32, i32, i32) {
    %c0_i32 = arith.constant 0 : i32
    %c0_i32_0 = arith.constant 0 : i32
    %c0_i32_1 = arith.constant 0 : i32
    %c0_i32_2 = arith.constant 0 : i32
    return %c0_i32, %c0_i32_0, %c0_i32_1 : i32, i32, i32
  }
  func.func @transform_1(%arg0: i32) -> (i32, i32, i32) {
    %c0_i32 = arith.constant 0 : i32
    %c0_i32_0 = arith.constant 0 : i32
    %c0_i32_1 = arith.constant 0 : i32
    return %arg0, %c0_i32, %c0_i32_0 : i32, i32, i32
  }
}

</mosaic_0001>

<llo_original>
// kernel: tpu_custom_call.1
$region0: #{tpu_custom_call.1}
  #allocation0 [shape = 'u32[]', space=smem, size = 0x4, offset = 0x4, fixed_abs, tag = 'smem constant byte address 0x4 - core index']
  #allocation1 [shape = 'u32[144,128]{1,0:T(1,128)}', space=vmem, size = 0x12000, scoped, tag = 'internal scratch']
  %s0 = inlined_call_operand.hbm [shape: f32[16,8,128], index: 0, kind: input, shape index: {}]
  %s1 = inlined_call_operand.hbm [shape: f32[64,4,128], index: 1, kind: output, shape index: {}]
  %s2 = sld [smem:[#allocation0]]
  $region41: #{tpu_custom_call.1} parent=0
    _
  %s4 = ssub.s32 1, %s2
  %s5 = scalar_select 0, %s4, %s2
  $region1: #{tpu_custom_call.1} parent=0
    #allocation2 [shape = 'u8[65536]{0}', space=vmem, size = 0x10000, scoped, tag = 'input window, operand 0, single buffered']
    #allocation3 [shape = 's32[2]{0}', space=sflag, size = 0x8, scoped, tag = 'scoped memory for tpu_custom_call.1']
    #allocation4 [shape = 's32[2]{0}', space=sflag, size = 0x8, scoped, tag = 'scoped memory for tpu_custom_call.1']
    #allocation5 [shape = 'u8[131072]{0}', space=vmem, size = 0x20000, scoped, tag = 'output window, operand 0']
    %6 = vsyncpa [#allocation3], 0
    %7 = vsyncpa [#allocation4], 0
    %s8 = scalar_lea.sflag [#allocation4], 1
    %9 = vsyncpa %s8, 0
    loop: start=0, step=1, limit=4
    $region2: #{tpu_custom_call.1} parent=1 // loop_pre_header
      _
    $region3: #{tpu_custom_call.1} parent=1 // loop_header
      %s11 = sphi 0, %s15
      %p12 = scmp.ge.s32.totalorder %s11, 4
      %s19 = sphi 0, %s19
      %s21 = sphi 0, %s19
      %s22 = sphi 0, %s21
      %s36 = sphi 0, %s22
      %s42 = sphi 0, %s44
      %s45 = sphi 0, %s42
      %s46 = sphi 0, %s45
      %s62 = sphi 0, %s46
    $region4: #{tpu_custom_call.1} parent=1 // loop_header_branch
      %14 = sbr.rel (%p12) target = $region8
    $region5: #{tpu_custom_call.1} parent=1 // loop_body
      %s16 = ssub.s32 %s11, 1
      %s17 = ssub.s32 %s11, 2
      %s18 = sadd.s32 %s11, 1
      %s20 = sadd.s32 %s19, 1
      %p23 = scmp.eq.s32.totalorder %s11, 1
      %p24 = scmp.ne.s32.totalorder %s19, %s21
      %p25 = scmp.eq.s32.totalorder %s11, 0
      %p26 = por %p24, %p25
      %p27 = scmp.ne.s32.totalorder %s19, %s21
      %p28 = scmp.eq.s32.totalorder %s16, 1
      %p29 = por %p27, %p28
      %p30 = scmp.ne.s32.totalorder %s21, %s22
      %p31 = scmp.eq.s32.totalorder %s16, 0
      %p32 = por %p30, %p31
      %p33 = scmp.ne.s32.totalorder %s21, %s22
      %p34 = scmp.eq.s32.totalorder %s17, 1
      %p35 = por %p33, %p34
      %p37 = scmp.ne.s32.totalorder %s22, %s36
      %p38 = scmp.eq.s32.totalorder %s17, 0
      %p39 = por %p37, %p38
      %s40 = ssub.s32 %s11, %s18
      %p41 = scmp.eq.s32.totalorder %s40, 0
      %s43 = sadd.s32 %s42, 1
      %s44 = scalar_select %p41, %s42, %s43
      %p47 = pneg %p41
      %p48 = scmp.eq.s32.totalorder %s11, 1
      %p49 = por %p47, %p48
      %p50 = scmp.ne.s32.totalorder %s42, %s45
      %p51 = scmp.eq.s32.totalorder %s11, 0
      %p52 = por %p50, %p51
      %p53 = scmp.ne.s32.totalorder %s42, %s45
      %p54 = scmp.eq.s32.totalorder %s16, 1
      %p55 = por %p53, %p54
      %p56 = scmp.ne.s32.totalorder %s45, %s46
      %p57 = scmp.eq.s32.totalorder %s16, 0
      %p58 = por %p56, %p57
      %p59 = scmp.ne.s32.totalorder %s45, %s46
      %p60 = scmp.eq.s32.totalorder %s17, 1
      %p61 = por %p59, %p60
      %p63 = scmp.ne.s32.totalorder %s46, %s62
      %p64 = scmp.eq.s32.totalorder %s17, 0
      %p65 = por %p63, %p64
      %p66 = scmp.le.s32.totalorder 1, %s11
      %p67 = scmp.lt.s32.totalorder %s11, 3
      %p68 = pnand %p66, %p67
      %p69 = pneg %p68
      // Predicated region
      $region9: #{tpu_custom_call.1} parent=5 // pred_check
        _
      $region10: #{tpu_custom_call.1} parent=5 // pred_check_branch
        %71 = sbr.rel (%p68) target = $region12
      $region11: #{tpu_custom_call.1} parent=5 // pred_region
        %s72 = ssub.s32 %s11, 1
        // Predicated region
        $region13: #{tpu_custom_call.1} parent=11 // pred_check
          %p73 = pneg %p32
        $region14: #{tpu_custom_call.1} parent=11 // pred_check_branch
          %75 = sbr.rel (%p73) target = $region16
        $region15: #{tpu_custom_call.1} parent=11 // pred_region
          %s77 = ssub.s32 2048, 2048
          %78 = vsyncadd [#allocation3], %s77
          %s79 = sshll.u32 [#allocation2], 4
          %s80 = int_to_ptr.vmem [resolvable:$true] %s79
          %85 = dma.hbm_to_vmem [thread:$0]  %s0, 2048, %s80, [#allocation3], 128, 128, 8
        $region16: #{tpu_custom_call.1} parent=11 // pred_fallthru
          _
      $region12: #{tpu_custom_call.1} parent=5 // pred_fallthru
        _
      %p86 = scmp.lt.s32.totalorder %s11, 2
      // Predicated region
      $region17: #{tpu_custom_call.1} parent=5 // pred_check
        %p87 = pneg %p86
      $region18: #{tpu_custom_call.1} parent=5 // pred_check_branch
        %89 = sbr.rel (%p87) target = $region20
      $region19: #{tpu_custom_call.1} parent=5 // pred_region
        _
      $region20: #{tpu_custom_call.1} parent=5 // pred_fallthru
        _
      %p90 = scmp.le.s32.totalorder 1, %s11
      %p91 = scmp.lt.s32.totalorder %s11, 3
      %p92 = pnand %p90, %p91
      %p93 = pneg %p92
      // Predicated region
      $region21: #{tpu_custom_call.1} parent=5 // pred_check
        _
      $region22: #{tpu_custom_call.1} parent=5 // pred_check_branch
        %95 = sbr.rel (%p92) target = $region24
      $region23: #{tpu_custom_call.1} parent=5 // pred_region
        %s96 = ssub.s32 %s11, 1
        // Predicated region
        $region25: #{tpu_custom_call.1} parent=23 // pred_check
          %p97 = pneg %p32
        $region26: #{tpu_custom_call.1} parent=23 // pred_check_branch
          %99 = sbr.rel (%p97) target = $region28
        $region27: #{tpu_custom_call.1} parent=23 // pred_region
          %100 = dma.done [#allocation3], 2048
        $region28: #{tpu_custom_call.1} parent=23 // pred_fallthru
          _
        %p101 = pneg %p32
        %p102 = pneg %p29
        %p103 = pneg %p58
        %p104 = pneg %p55
        %s105 = sand.u32 %s45, 1
        %s106 = scalar_lea.sflag [#allocation4], %s105
        %s107 = sand.u32 %s45, 1
        %s108 = smul.addr %s107, 128
        %s109 = scalar_lea.vmem [#allocation5], %s108
        %s110 = smul.u32 32, %s16
        %s111 = smul.u32 %s16, 2
        %s112 = ssub.s32 3, %s111
        %s113 = scalar_lea.vmem [#allocation2], %s112
        %v114 = vld [vmem:[%s113] sm:$0xf]
        %115 = vst [vmem:[%s109] sm:$0xf] %v114
        %s116 = sadd.s32 %s112, 8
        %s117 = scalar_lea.vmem [#allocation2], %s116
        %v118 = vld [vmem:[%s117] sm:$0xf]
        %s119 = scalar_lea.vmem %s109, 4 [#allocation5]
        %120 = vst [vmem:[%s119] sm:$0xf] %v118
        %s121 = sadd.s32 %s112, 16
        %s122 = scalar_lea.vmem [#allocation2], %s121
        %v123 = vld [vmem:[%s122] sm:$0xf]
        %s124 = scalar_lea.vmem %s109, 8 [#allocation5]
        %125 = vst [vmem:[%s124] sm:$0xf] %v123
        %s126 = sadd.s32 %s112, 24
        %s127 = scalar_lea.vmem [#allocation2], %s126
        %v128 = vld [vmem:[%s127] sm:$0xf]
        %s129 = scalar_lea.vmem %s109, 12 [#allocation5]
        %130 = vst [vmem:[%s129] sm:$0xf] %v128
        %s131 = sadd.s32 %s112, 32
        %s132 = scalar_lea.vmem [#allocation2], %s131
        %v133 = vld [vmem:[%s132] sm:$0xf]
        %s134 = scalar_lea.vmem %s109, 16 [#allocation5]
        %135 = vst [vmem:[%s134] sm:$0xf] %v133
        %s136 = sadd.s32 %s112, 40
        %s137 = scalar_lea.vmem [#allocation2], %s136
        %v138 = vld [vmem:[%s137] sm:$0xf]
        %s139 = scalar_lea.vmem %s109, 20 [#allocation5]
        %140 = vst [vmem:[%s139] sm:$0xf] %v138
        %s141 = sadd.s32 %s112, 48
        %s142 = scalar_lea.vmem [#allocation2], %s141
        %v143 = vld [vmem:[%s142] sm:$0xf]
        %s144 = scalar_lea.vmem %s109, 24 [#allocation5]
        %145 = vst [vmem:[%s144] sm:$0xf] %v143
        %s146 = sadd.s32 %s112, 56
        %s147 = scalar_lea.vmem [#allocation2], %s146
        %v148 = vld [vmem:[%s147] sm:$0xf]
        %s149 = scalar_lea.vmem %s109, 28 [#allocation5]
        %150 = vst [vmem:[%s149] sm:$0xf] %v148
        %s151 = sadd.s32 %s112, 64
        %s152 = scalar_lea.vmem [#allocation2], %s151
        %v153 = vld [vmem:[%s152] sm:$0xf]
        %s154 = scalar_lea.vmem %s109, 32 [#allocation5]
        %155 = vst [vmem:[%s154] sm:$0xf] %v153
        %s156 = sadd.s32 %s112, 72
        %s157 = scalar_lea.vmem [#allocation2], %s156
        %v158 = vld [vmem:[%s157] sm:$0xf]
        %s159 = scalar_lea.vmem %s109, 36 [#allocation5]
        %160 = vst [vmem:[%s159] sm:$0xf] %v158
        %s161 = sadd.s32 %s112, 80
        %s162 = scalar_lea.vmem [#allocation2], %s161
        %v163 = vld [vmem:[%s162] sm:$0xf]
        %s164 = scalar_lea.vmem %s109, 40 [#allocation5]
        %165 = vst [vmem:[%s164] sm:$0xf] %v163
        %s166 = sadd.s32 %s112, 88
        %s167 = scalar_lea.vmem [#allocation2], %s166
        %v168 = vld [vmem:[%s167] sm:$0xf]
        %s169 = scalar_lea.vmem %s109, 44 [#allocation5]
        %170 = vst [vmem:[%s169] sm:$0xf] %v168
        %s171 = sadd.s32 %s112, 96
        %s172 = scalar_lea.vmem [#allocation2], %s171
        %v173 = vld [vmem:[%s172] sm:$0xf]
        %s174 = scalar_lea.vmem %s109, 48 [#allocation5]
        %175 = vst [vmem:[%s174] sm:$0xf] %v173
        %s176 = sadd.s32 %s112, 104
        %s177 = scalar_lea.vmem [#allocation2], %s176
        %v178 = vld [vmem:[%s177] sm:$0xf]
        %s179 = scalar_lea.vmem %s109, 52 [#allocation5]
        %180 = vst [vmem:[%s179] sm:$0xf] %v178
        %s181 = sadd.s32 %s112, 112
        %s182 = scalar_lea.vmem [#allocation2], %s181
        %v183 = vld [vmem:[%s182] sm:$0xf]
        %s184 = scalar_lea.vmem %s109, 56 [#allocation5]
        %185 = vst [vmem:[%s184] sm:$0xf] %v183
        %s186 = sadd.s32 %s112, 120
        %s187 = scalar_lea.vmem [#allocation2], %s186
        %v188 = vld [vmem:[%s187] sm:$0xf]
        %s189 = scalar_lea.vmem %s109, 60 [#allocation5]
        %190 = vst [vmem:[%s189] sm:$0xf] %v188
        %s191 = ssub.s32 2, %s111
        %s192 = scalar_lea.vmem [#allocation2], %s191
        %v193 = vld [vmem:[%s192] sm:$0xf]
        %s194 = scalar_lea.vmem %s109, 64 [#allocation5]
        %195 = vst [vmem:[%s194] sm:$0xf] %v193
        %s196 = sadd.s32 %s191, 8
        %s197 = scalar_lea.vmem [#allocation2], %s196
        %v198 = vld [vmem:[%s197] sm:$0xf]
        %s199 = scalar_lea.vmem %s109, 68 [#allocation5]
        %200 = vst [vmem:[%s199] sm:$0xf] %v198
        %s201 = sadd.s32 %s191, 16
        %s202 = scalar_lea.vmem [#allocation2], %s201
        %v203 = vld [vmem:[%s202] sm:$0xf]
        %s204 = scalar_lea.vmem %s109, 72 [#allocation5]
        %205 = vst [vmem:[%s204] sm:$0xf] %v203
        %s206 = sadd.s32 %s191, 24
        %s207 = scalar_lea.vmem [#allocation2], %s206
        %v208 = vld [vmem:[%s207] sm:$0xf]
        %s209 = scalar_lea.vmem %s109, 76 [#allocation5]
        %210 = vst [vmem:[%s209] sm:$0xf] %v208
        %s211 = sadd.s32 %s191, 32
        %s212 = scalar_lea.vmem [#allocation2], %s211
        %v213 = vld [vmem:[%s212] sm:$0xf]
        %s214 = scalar_lea.vmem %s109, 80 [#allocation5]
        %215 = vst [vmem:[%s214] sm:$0xf] %v213
        %s216 = sadd.s32 %s191, 40
        %s217 = scalar_lea.vmem [#allocation2], %s216
        %v218 = vld [vmem:[%s217] sm:$0xf]
        %s219 = scalar_lea.vmem %s109, 84 [#allocation5]
        %220 = vst [vmem:[%s219] sm:$0xf] %v218
        %s221 = sadd.s32 %s191, 48
        %s222 = scalar_lea.vmem [#allocation2], %s221
        %v223 = vld [vmem:[%s222] sm:$0xf]
        %s224 = scalar_lea.vmem %s109, 88 [#allocation5]
        %225 = vst [vmem:[%s224] sm:$0xf] %v223
        %s226 = sadd.s32 %s191, 56
        %s227 = scalar_lea.vmem [#allocation2], %s226
        %v228 = vld [vmem:[%s227] sm:$0xf]
        %s229 = scalar_lea.vmem %s109, 92 [#allocation5]
        %230 = vst [vmem:[%s229] sm:$0xf] %v228
        %s231 = sadd.s32 %s191, 64
        %s232 = scalar_lea.vmem [#allocation2], %s231
        %v233 = vld [vmem:[%s232] sm:$0xf]
        %s234 = scalar_lea.vmem %s109, 96 [#allocation5]
        %235 = vst [vmem:[%s234] sm:$0xf] %v233
        %s236 = sadd.s32 %s191, 72
        %s237 = scalar_lea.vmem [#allocation2], %s236
        %v238 = vld [vmem:[%s237] sm:$0xf]
        %s239 = scalar_lea.vmem %s109, 100 [#allocation5]
        %240 = vst [vmem:[%s239] sm:$0xf] %v238
        %s241 = sadd.s32 %s191, 80
        %s242 = scalar_lea.vmem [#allocation2], %s241
        %v243 = vld [vmem:[%s242] sm:$0xf]
        %s244 = scalar_lea.vmem %s109, 104 [#allocation5]
        %245 = vst [vmem:[%s244] sm:$0xf] %v243
        %s246 = sadd.s32 %s191, 88
        %s247 = scalar_lea.vmem [#allocation2], %s246
        %v248 = vld [vmem:[%s247] sm:$0xf]
        %s249 = scalar_lea.vmem %s109, 108 [#allocation5]
        %250 = vst [vmem:[%s249] sm:$0xf] %v248
        %s251 = sadd.s32 %s191, 96
        %s252 = scalar_lea.vmem [#allocation2], %s251
        %v253 = vld [vmem:[%s252] sm:$0xf]
        %s254 = scalar_lea.vmem %s109, 112 [#allocation5]
        %255 = vst [vmem:[%s254] sm:$0xf] %v253
        %s256 = sadd.s32 %s191, 104
        %s257 = scalar_lea.vmem [#allocation2], %s256
        %v258 = vld [vmem:[%s257] sm:$0xf]
        %s259 = scalar_lea.vmem %s109, 116 [#allocation5]
        %260 = vst [vmem:[%s259] sm:$0xf] %v258
        %s261 = sadd.s32 %s191, 112
        %s262 = scalar_lea.vmem [#allocation2], %s261
        %v263 = vld [vmem:[%s262] sm:$0xf]
        %s264 = scalar_lea.vmem %s109, 120 [#allocation5]
        %265 = vst [vmem:[%s264] sm:$0xf] %v263
        %s266 = sadd.s32 %s191, 120
        %s267 = scalar_lea.vmem [#allocation2], %s266
        %v268 = vld [vmem:[%s267] sm:$0xf]
        %s269 = scalar_lea.vmem %s109, 124 [#allocation5]
        %270 = vst [vmem:[%s269] sm:$0xf] %v268
        %s271 = sand.u32 %s45, 1
        %s272 = scalar_lea.sflag [#allocation4], %s271
        %s273 = sand.u32 %s45, 1
        %s274 = smul.addr %s273, 128
        %s275 = scalar_lea.vmem [#allocation5], %s274
        // Predicated region
        $region29: #{tpu_custom_call.1} parent=23 // pred_check
          %p276 = pneg %p55
        $region30: #{tpu_custom_call.1} parent=23 // pred_check_branch
          %278 = sbr.rel (%p276) target = $region32
        $region31: #{tpu_custom_call.1} parent=23 // pred_region
          %s279 = smul.u32 32, %s16
          %s281 = ssub.s32 2048, 2048
          %282 = vsyncadd %s272, %s281
          %s283 = smul.addr %s279, 64
          %s284 = scalar_lea.hbm %s1, %s283
          %s285 = sshll.u32 %s275, 4
          %s286 = int_to_ptr.vmem [resolvable:$true] %s285
          %291 = dma.vmem_to_hbm [thread:$0]  %s286, 2048, %s284, %s272, 64, 64, 4
        $region32: #{tpu_custom_call.1} parent=23 // pred_fallthru
          _
      $region24: #{tpu_custom_call.1} parent=5 // pred_fallthru
        _
      %p292 = scmp.le.s32.totalorder 2, %s11
      // Predicated region
      $region33: #{tpu_custom_call.1} parent=5 // pred_check
        %p293 = pneg %p292
      $region34: #{tpu_custom_call.1} parent=5 // pred_check_branch
        %295 = sbr.rel (%p293) target = $region36
      $region35: #{tpu_custom_call.1} parent=5 // pred_region
        %s296 = ssub.s32 %s11, 2
        // Predicated region
        $region37: #{tpu_custom_call.1} parent=35 // pred_check
          %p297 = pneg %p61
        $region38: #{tpu_custom_call.1} parent=35 // pred_check_branch
          %299 = sbr.rel (%p297) target = $region40
        $region39: #{tpu_custom_call.1} parent=35 // pred_region
          %s300 = sand.u32 %s46, 1
          %s301 = scalar_lea.sflag [#allocation4], %s300
          %s302 = sand.u32 %s46, 1
          %s303 = smul.addr %s302, 128
          %s304 = scalar_lea.vmem [#allocation5], %s303
          %305 = dma.done %s301, 2048
        $region40: #{tpu_custom_call.1} parent=35 // pred_fallthru
          _
      $region36: #{tpu_custom_call.1} parent=5 // pred_fallthru
        _
    $region6: #{tpu_custom_call.1} parent=1 // loop_footer
      %s15 = sadd.s32 1, %s11
    $region7: #{tpu_custom_call.1} parent=1 // loop_footer_branch
      %10 = sbr.rel target = $region3
    $region8: #{tpu_custom_call.1} parent=1 // loop_exit
      _
    %306 = vsyncpa [#allocation3], 1
    %s307 = scalar_lea.sflag [#allocation3], 1
    %308 = vsyncpa %s307, 1
    %309 = vsyncpa [#allocation4], 1
    %s310 = scalar_lea.sflag [#allocation4], 1
    %311 = vsyncpa %s310, 1

</llo_original>
